<compile_context>
chip_gen: v7x
topology: tpu7x:2x2x1
jax: 0.10.0
libtpu: 0.0.40
codegen_flags: <defaults>
</compile_context>

<pallas_src>
import functools

import jax
import jax.numpy as jnp
from jax.experimental import pallas as pl
from jax.experimental.pallas import tpu as pltpu

SUBLANE = 8
MAX_BLOCK_M = 1024          # large tiles amortize ~0.35 us per-grid-step overhead
LATENCY_MAX_B = 256         # below this: single grid point, no padding at all


def _round_up(n, m):
    return ((n + m - 1) // m) * m


def actor_mlp_kernel(x_ref, w1_ref, b1_ref, w2_ref, b2_ref, w3_ref, b3_ref,
                     o_ref, *, tanh_dtype):
    x = x_ref[...]

    # Layer 1: Linear (MXU, f32 accumulation) + bias + Tanh
    w1 = w1_ref[...]
    h = jnp.dot(x.astype(w1.dtype), w1, preferred_element_type=jnp.float32)
    h = jnp.tanh((h + b1_ref[...]).astype(tanh_dtype))

    # Layer 2: Linear + bias + Tanh
    w2 = w2_ref[...]
    h = jnp.dot(h.astype(w2.dtype), w2, preferred_element_type=jnp.float32)
    h = jnp.tanh((h + b2_ref[...]).astype(tanh_dtype))

    # Output head: mu = Linear(h)   (narrow, unpadded output columns)
    w3 = w3_ref[...]
    mu = jnp.dot(h.astype(w3.dtype), w3, preferred_element_type=jnp.float32)
    o_ref[...] = (mu + b3_ref[...]).astype(o_ref.dtype)


def actor_forward(x, params, *, bf16_tanh=False):
    """x: (B, state_dim) float32 -> mu: (B, action_dim) float32.

    bf16_tanh=True evaluates bias-add + tanh in bf16 (good on v6e/v7x which
    have bf16 VPU/EUP); default False keeps the activation path in f32 (v5e).
    """
    w1, b1, w2, b2, w3, b3 = (params["w1"], params["b1"], params["w2"],
                              params["b2"], params["w3"], params["b3"])
    B, state_dim = x.shape
    hidden = w1.shape[1]
    action_dim = w3.shape[1]

    if B <= LATENCY_MAX_B:
        # Latency mode: one grid point, block shapes = full array dims, no
        # padding and no post-kernel slice.
        block_m, b_pad, grid_m = B, B, 1
    else:
        # Throughput mode: large batch tiles (step-overhead bound regime),
        # but keep >= 2 tiles so v7x's two TensorCores both get work.
        block_m = min(MAX_BLOCK_M, _round_up(pl.cdiv(B, 2), SUBLANE))
        b_pad = _round_up(B, block_m)
        grid_m = b_pad // block_m

    x_in = x if b_pad == B else jnp.pad(x, ((0, b_pad - B), (0, 0)))

    itemsize = lambda a: a.size * a.dtype.itemsize
    param_arrays = (w1, b1, w2, b2, w3, b3)
    cost = pl.CostEstimate(
        flops=2 * b_pad * (state_dim * hidden + hidden * hidden + hidden * action_dim),
        transcendentals=2 * b_pad * hidden,
        bytes_accessed=itemsize(x_in) + sum(itemsize(p) for p in param_arrays)
        + b_pad * action_dim * 4,
    )

    # Weights/biases: full-array blocks with a constant index_map -> loaded
    # into VMEM once and resident across all batch-tile grid iterations.
    def resident(arr):
        return pl.BlockSpec(arr.shape, lambda i: tuple(0 for _ in arr.shape))

    kernel = functools.partial(
        actor_mlp_kernel,
        tanh_dtype=jnp.bfloat16 if bf16_tanh else jnp.float32,
    )

    out = pl.pallas_call(
        kernel,
        out_shape=jax.ShapeDtypeStruct((b_pad, action_dim), jnp.float32),
        grid=(grid_m,),
        in_specs=[
            pl.BlockSpec((block_m, state_dim), lambda i: (i, 0)),
            resident(w1), resident(b1),
            resident(w2), resident(b2),
            resident(w3), resident(b3),
        ],
        out_specs=pl.BlockSpec((block_m, action_dim), lambda i: (i, 0)),
        compiler_params=pltpu.CompilerParams(dimension_semantics=("parallel",)),
        cost_estimate=cost,
    )(x_in, w1, b1, w2, b2, w3, b3)

    return out if b_pad == B else out[:B]


def init_actor_params(key, state_dim, action_dim, hidden_size=64,
                      matmul_dtype=jnp.bfloat16):
    """Deterministic init; weights stored as (in_dim, out_dim).

    Default matmul_dtype=bf16 (native MXU path on all generations); biases
    stay f32.  Pass matmul_dtype=jnp.float32 for exact-f32 numerics.
    """
    k1, k2, k3, k4, k5, k6 = jax.random.split(key, 6)

    def linear_init(kw, kb, fan_in, fan_out):
        # Mirror PyTorch's default uniform(-1/sqrt(fan_in), 1/sqrt(fan_in))
        bound = 1.0 / jnp.sqrt(jnp.float32(fan_in))
        w = jax.random.uniform(kw, (fan_in, fan_out), jnp.float32, -bound, bound)
        b = jax.random.uniform(kb, (1, fan_out), jnp.float32, -bound, bound)
        return w, b

    w1, b1 = linear_init(k1, k2, state_dim, hidden_size)
    w2, b2 = linear_init(k3, k4, hidden_size, hidden_size)
    w3, b3 = linear_init(k5, k6, hidden_size, action_dim)

    # TODO(synk): log_std / get_dist / act (Normal sampling) are not part of
    # forward() and are not ported.
    return {
        "w1": w1.astype(matmul_dtype), "b1": b1,
        "w2": w2.astype(matmul_dtype), "b2": b2,
        "w3": w3.astype(matmul_dtype), "b3": b3,
    }


def actor_forward_ref(x, params):
    """Plain-JAX reference for correctness checking (f32 throughout)."""
    w1, b1 = params["w1"].astype(jnp.float32), params["b1"]
    w2, b2 = params["w2"].astype(jnp.float32), params["b2"]
    w3, b3 = params["w3"].astype(jnp.float32), params["b3"]
    h = jnp.tanh(x @ w1 + b1)
    h = jnp.tanh(h @ w2 + b2)
    return h @ w3 + b3


if __name__ == "__main__":
    key = jax.random.PRNGKey(0)
    k_params, k_x, k_x_big, k_x_odd = jax.random.split(key, 4)

    batch, state_dim, action_dim, hidden = 8, 8, 4, 64

    # --- latency mode: small batch, f32 weights, single fused pallas_call ----
    params_f32 = init_actor_params(k_params, state_dim, action_dim, hidden,
                                   matmul_dtype=jnp.float32)
    x = jax.random.normal(k_x, (batch, state_dim), jnp.float32)

    mu = actor_forward(x, params_f32)
    jax.block_until_ready(mu)
    mu_ref = actor_forward_ref(x, params_f32)
    assert mu.shape == (batch, action_dim)
    assert jnp.allclose(mu, mu_ref, atol=1e-5, rtol=1e-5)

    # --- throughput mode: large batch, 2 big tiles over a parallel grid ------
    big_batch = 2048
    x_big = jax.random.normal(k_x_big, (big_batch, state_dim), jnp.float32)
    mu_big = actor_forward(x_big, params_f32)
    jax.block_until_ready(mu_big)
    mu_big_ref = actor_forward_ref(x_big, params_f32)
    assert mu_big.shape == (big_batch, action_dim)
    assert jnp.allclose(mu_big, mu_big_ref, atol=1e-5, rtol=1e-5)

    # --- throughput mode with a non-divisible batch (exercises padding) ------
    odd_batch = 600
    x_odd = jax.random.normal(k_x_odd, (odd_batch, state_dim), jnp.float32)
    mu_odd = actor_forward(x_odd, params_f32)
    jax.block_until_ready(mu_odd)
    mu_odd_ref = actor_forward_ref(x_odd, params_f32)
    assert mu_odd.shape == (odd_batch, action_dim)
    assert jnp.allclose(mu_odd, mu_odd_ref, atol=1e-5, rtol=1e-5)

    # --- default bf16 MXU weights + bf16 tanh path (f32 accumulation) --------
    params_bf16 = init_actor_params(k_params, state_dim, action_dim, hidden)
    mu_bf16 = actor_forward(x_big, params_bf16, bf16_tanh=True)
    jax.block_until_ready(mu_bf16)
    assert mu_bf16.shape == (big_batch, action_dim)
    assert jnp.allclose(mu_bf16, mu_big_ref, atol=1e-1, rtol=1e-1)

    print("KERNEL_OK")
</pallas_src>

<mosaic_0001>
module attributes {stable_mosaic.version = 11 : i64} {
  func.func @actor_mlp_kernel(%arg0: i32, %arg1: memref<8x8xf32, #tpu.memory_space<vmem>>, %arg2: memref<8x64xf32, #tpu.memory_space<vmem>>, %arg3: memref<1x64xf32, #tpu.memory_space<vmem>>, %arg4: memref<64x64xf32, #tpu.memory_space<vmem>>, %arg5: memref<1x64xf32, #tpu.memory_space<vmem>>, %arg6: memref<64x4xf32, #tpu.memory_space<vmem>>, %arg7: memref<1x4xf32, #tpu.memory_space<vmem>>, %arg8: memref<8x4xf32, #tpu.memory_space<vmem>>) attributes {dimension_semantics = [#tpu.dimension_semantics<parallel>], iteration_bounds = array<i64: 1>, scalar_prefetch = 0 : i64, scratch_operands = 0 : i64, tpu.core_type = #tpu.core_type<tc>, window_params = [{transform_indices = @transform_0, window_bounds = array<i64: 8, 8>}, {pipeline_mode = #tpu.pipeline_mode<synchronous>, transform_indices = @transform_1, window_bounds = array<i64: 8, 64>}, {pipeline_mode = #tpu.pipeline_mode<synchronous>, transform_indices = @transform_2, window_bounds = array<i64: 1, 64>}, {pipeline_mode = #tpu.pipeline_mode<synchronous>, transform_indices = @transform_3, window_bounds = array<i64: 64, 64>}, {pipeline_mode = #tpu.pipeline_mode<synchronous>, transform_indices = @transform_4, window_bounds = array<i64: 1, 64>}, {pipeline_mode = #tpu.pipeline_mode<synchronous>, transform_indices = @transform_5, window_bounds = array<i64: 64, 4>}, {pipeline_mode = #tpu.pipeline_mode<synchronous>, transform_indices = @transform_6, window_bounds = array<i64: 1, 4>}, {transform_indices = @transform_7, window_bounds = array<i64: 8, 4>}]} {
    %c0 = arith.constant 0 : index
    %c0_0 = arith.constant 0 : index
    %0 = vector.load %arg1[%c0, %c0_0] : memref<8x8xf32, #tpu.memory_space<vmem>>, vector<8x8xf32>
    %c0_1 = arith.constant 0 : index
    %c0_2 = arith.constant 0 : index
    %1 = vector.load %arg2[%c0_1, %c0_2] : memref<8x64xf32, #tpu.memory_space<vmem>>, vector<8x64xf32>
    %cst = arith.constant dense<0.000000e+00> : vector<8x64xf32>
    %2 = tpu.matmul %0, %1, %cst {dimension_numbers = #tpu.dot_dimension_numbers<[1], [0], [0], [1], [0, 0, 1, 1], [], []>} : vector<8x8xf32>, vector<8x64xf32>, vector<8x64xf32> -> vector<8x64xf32>
    %c0_3 = arith.constant 0 : index
    %c0_4 = arith.constant 0 : index
    %3 = vector.load %arg3[%c0_3, %c0_4] : memref<1x64xf32, #tpu.memory_space<vmem>>, vector<1x64xf32>
    %4 = vector.broadcast %3 : vector<1x64xf32> to vector<8x64xf32>
    %5 = arith.addf %2, %4 : vector<8x64xf32>
    %6 = math.tanh %5 : vector<8x64xf32>
    %c0_5 = arith.constant 0 : index
    %c0_6 = arith.constant 0 : index
    %7 = vector.load %arg4[%c0_5, %c0_6] : memref<64x64xf32, #tpu.memory_space<vmem>>, vector<64x64xf32>
    %cst_7 = arith.constant dense<0.000000e+00> : vector<8x64xf32>
    %8 = tpu.matmul %6, %7, %cst_7 {dimension_numbers = #tpu.dot_dimension_numbers<[1], [0], [0], [1], [0, 0, 1, 1], [], []>} : vector<8x64xf32>, vector<64x64xf32>, vector<8x64xf32> -> vector<8x64xf32>
    %c0_8 = arith.constant 0 : index
    %c0_9 = arith.constant 0 : index
    %9 = vector.load %arg5[%c0_8, %c0_9] : memref<1x64xf32, #tpu.memory_space<vmem>>, vector<1x64xf32>
    %10 = vector.broadcast %9 : vector<1x64xf32> to vector<8x64xf32>
    %11 = arith.addf %8, %10 : vector<8x64xf32>
    %12 = math.tanh %11 : vector<8x64xf32>
    %c0_10 = arith.constant 0 : index
    %c0_11 = arith.constant 0 : index
    %13 = vector.load %arg6[%c0_10, %c0_11] : memref<64x4xf32, #tpu.memory_space<vmem>>, vector<64x4xf32>
    %cst_12 = arith.constant dense<0.000000e+00> : vector<8x4xf32>
    %14 = tpu.matmul %12, %13, %cst_12 {dimension_numbers = #tpu.dot_dimension_numbers<[1], [0], [0], [1], [0, 0, 1, 1], [], []>} : vector<8x64xf32>, vector<64x4xf32>, vector<8x4xf32> -> vector<8x4xf32>
    %c0_13 = arith.constant 0 : index
    %c0_14 = arith.constant 0 : index
    %15 = vector.load %arg7[%c0_13, %c0_14] : memref<1x4xf32, #tpu.memory_space<vmem>>, vector<1x4xf32>
    %16 = vector.broadcast %15 : vector<1x4xf32> to vector<8x4xf32>
    %17 = arith.addf %14, %16 : vector<8x4xf32>
    %c0_15 = arith.constant 0 : index
    %c0_16 = arith.constant 0 : index
    %18 = vector.load %arg8[%c0_15, %c0_16] : memref<8x4xf32, #tpu.memory_space<vmem>>, vector<8x4xf32>
    tpu.vector_store %arg8[%c0_15, %c0_16], %17 {strides = array<i32>} : memref<8x4xf32, #tpu.memory_space<vmem>>, vector<8x4xf32>,
    return
  }
  func.func @transform_0(%arg0: i32) -> (i32, i32) {
    %c0_i32 = arith.constant 0 : i32
    %c0_i32_0 = arith.constant 0 : i32
    return %arg0, %c0_i32 : i32, i32
  }
  func.func @transform_1(%arg0: i32) -> (i32, i32) {
    %c0_i32 = arith.constant 0 : i32
    %c0_i32_0 = arith.constant 0 : i32
    %c0_i32_1 = arith.constant 0 : i32
    return %c0_i32, %c0_i32_0 : i32, i32
  }
  func.func @transform_2(%arg0: i32) -> (i32, i32) {
    %c0_i32 = arith.constant 0 : i32
    %c0_i32_0 = arith.constant 0 : i32
    %c0_i32_1 = arith.constant 0 : i32
    return %c0_i32, %c0_i32_0 : i32, i32
  }
  func.func @transform_3(%arg0: i32) -> (i32, i32) {
    %c0_i32 = arith.constant 0 : i32
    %c0_i32_0 = arith.constant 0 : i32
    %c0_i32_1 = arith.constant 0 : i32
    return %c0_i32, %c0_i32_0 : i32, i32
  }
  func.func @transform_4(%arg0: i32) -> (i32, i32) {
    %c0_i32 = arith.constant 0 : i32
    %c0_i32_0 = arith.constant 0 : i32
    %c0_i32_1 = arith.constant 0 : i32
    return %c0_i32, %c0_i32_0 : i32, i32
  }
  func.func @transform_5(%arg0: i32) -> (i32, i32) {
    %c0_i32 = arith.constant 0 : i32
    %c0_i32_0 = arith.constant 0 : i32
    %c0_i32_1 = arith.constant 0 : i32
    return %c0_i32, %c0_i32_0 : i32, i32
  }
  func.func @transform_6(%arg0: i32) -> (i32, i32) {
    %c0_i32 = arith.constant 0 : i32
    %c0_i32_0 = arith.constant 0 : i32
    %c0_i32_1 = arith.constant 0 : i32
    return %c0_i32, %c0_i32_0 : i32, i32
  }
  func.func @transform_7(%arg0: i32) -> (i32, i32) {
    %c0_i32 = arith.constant 0 : i32
    %c0_i32_0 = arith.constant 0 : i32
    return %arg0, %c0_i32 : i32, i32
  }
}

</mosaic_0001>

<llo_original>
// kernel: tpu_custom_call.1
$region0: #{tpu_custom_call.1}
  #allocation0 [shape = 'u32[]', space=smem, size = 0x4, offset = 0x4, fixed_abs, tag = 'smem constant byte address 0x4 - core index']
  #allocation1 [shape = 'u32[144,128]{1,0:T(1,128)}', space=vmem, size = 0x12000, scoped, tag = 'internal scratch']
  %s0 = inlined_call_operand.vmem [shape: f32[8,8], index: 0, kind: input, shape index: {}]
  %s1 = inlined_call_operand.hbm [shape: f32[8,64], index: 1, kind: input, shape index: {}]
  %s2 = inlined_call_operand.vmem [shape: f32[1,64], index: 2, kind: input, shape index: {}]
  %s3 = inlined_call_operand.vmem [shape: f32[64,64], index: 3, kind: input, shape index: {}]
  %s4 = inlined_call_operand.vmem [shape: f32[1,64], index: 4, kind: input, shape index: {}]
  %s5 = inlined_call_operand.vmem [shape: f32[64,4], index: 5, kind: input, shape index: {}]
  %s6 = inlined_call_operand.vmem [shape: f32[1,4], index: 6, kind: input, shape index: {}]
  %s7 = inlined_call_operand.vmem [shape: f32[8,4], index: 7, kind: output, shape index: {}]
  %s8 = sld [smem:[#allocation0]]
  $region42: #{tpu_custom_call.1} parent=0
    _
  %s10 = ssub.s32 1, %s8
  %s11 = scalar_select 0, %s10, %s8
  $region1: #{tpu_custom_call.1} parent=0
    #allocation2 [shape = 'u8[4096]{0}', space=vmem, size = 0x1000, scoped, tag = 'input window, operand 1, single buffered']
    #allocation3 [shape = 's32[1]{0}', space=sflag, size = 0x4, scoped, tag = 'scoped memory for tpu_custom_call.1']
    %12 = vsyncpa [#allocation3], 0
    // Predicated region
    $region2: #{tpu_custom_call.1} parent=1 // pred_check
      _
    $region3: #{tpu_custom_call.1} parent=1 // pred_check_branch
      %14 = sbr.rel (0) target = $region5
    $region4: #{tpu_custom_call.1} parent=1 // pred_region
      _
    $region5: #{tpu_custom_call.1} parent=1 // pred_fallthru
      _
    // Predicated region
    $region6: #{tpu_custom_call.1} parent=1 // pred_check
      _
    $region7: #{tpu_custom_call.1} parent=1 // pred_check_branch
      %16 = sbr.rel (0) target = $region9
    $region8: #{tpu_custom_call.1} parent=1 // pred_region
      %s18 = ssub.s32 128, 128
      %19 = vsyncadd [#allocation3], %s18
      %s21 = sshll.u32 [#allocation2], 4
      %s22 = int_to_ptr.vmem [resolvable:$true] %s21
      %24 = dma.hbm_to_vmem [thread:$0]  %s1, 128, %s22, [#allocation3]
    $region9: #{tpu_custom_call.1} parent=1 // pred_fallthru
      _
    // Predicated region
    $region10: #{tpu_custom_call.1} parent=1 // pred_check
      _
    $region11: #{tpu_custom_call.1} parent=1 // pred_check_branch
      %26 = sbr.rel (0) target = $region13
    $region12: #{tpu_custom_call.1} parent=1 // pred_region
      _
    $region13: #{tpu_custom_call.1} parent=1 // pred_fallthru
      _
    // Predicated region
    $region14: #{tpu_custom_call.1} parent=1 // pred_check
      _
    $region15: #{tpu_custom_call.1} parent=1 // pred_check_branch
      %28 = sbr.rel (0) target = $region17
    $region16: #{tpu_custom_call.1} parent=1 // pred_region
      _
    $region17: #{tpu_custom_call.1} parent=1 // pred_fallthru
      _
    // Predicated region
    $region18: #{tpu_custom_call.1} parent=1 // pred_check
      _
    $region19: #{tpu_custom_call.1} parent=1 // pred_check_branch
      %30 = sbr.rel (0) target = $region21
    $region20: #{tpu_custom_call.1} parent=1 // pred_region
      _
    $region21: #{tpu_custom_call.1} parent=1 // pred_fallthru
      _
    // Predicated region
    $region22: #{tpu_custom_call.1} parent=1 // pred_check
      _
    $region23: #{tpu_custom_call.1} parent=1 // pred_check_branch
      %32 = sbr.rel (0) target = $region25
    $region24: #{tpu_custom_call.1} parent=1 // pred_region
      _
    $region25: #{tpu_custom_call.1} parent=1 // pred_fallthru
      _
    // Predicated region
    $region26: #{tpu_custom_call.1} parent=1 // pred_check
      _
    $region27: #{tpu_custom_call.1} parent=1 // pred_check_branch
      %34 = sbr.rel (0) target = $region29
    $region28: #{tpu_custom_call.1} parent=1 // pred_region
      _
    $region29: #{tpu_custom_call.1} parent=1 // pred_fallthru
      _
    // Predicated region
    $region30: #{tpu_custom_call.1} parent=1 // pred_check
      _
    $region31: #{tpu_custom_call.1} parent=1 // pred_check_branch
      %36 = sbr.rel (0) target = $region33
    $region32: #{tpu_custom_call.1} parent=1 // pred_region
      %37 = dma.done [#allocation3], 128
    $region33: #{tpu_custom_call.1} parent=1 // pred_fallthru
      _
    %v38 = vld [vmem:[%s0] sm:$0xff]
    %v39 = vld [vmem:[#allocation2] sm:$0xff]
    %v40 = vld [vmem:[%s2] sm:$0x1]
    %v42 = vlaneseq
    %v43 = vshrl.u32 %v42, 7
    %v44 = vsub.s32 0, %v43
    %v45 = vrot.slane %v40, %v44
    %vm47 = vcmask 64512
    %v49 = vsel %vm47, %v38, 0
    %51 = vmatprep.subr.mxu0 0.0
    %52 = vmatpush1.msra.mxu0 %v39
    %53 = vmatprep.subr.mxu0 0.0
    %54 = vmatpush1.msra.mxu0 0.0
    %55 = vmatprep.subr.mxu0 0.0
    %56 = vmatpush1.msra.mxu0 0.0
    %57 = vmatprep.subr.mxu0 0.0
    %58 = vmatpush1.msra.mxu0 0.0
    %59 = vmatprep.subr.mxu0 0.0
    %60 = vmatpush1.msra.mxu0 0.0
    %61 = vmatprep.subr.mxu0 0.0
    %62 = vmatpush1.msra.mxu0 0.0
    %63 = vmatprep.subr.mxu0 0.0
    %64 = vmatpush1.msra.mxu0 0.0
    %65 = vmatprep.subr.mxu0 0.0
    %66 = vmatpush1.msra.mxu0 0.0
    %67 = vmatprep.subr.mxu0 0.0
    %68 = vmatpush1.msra.mxu0 0.0
    %69 = vmatprep.subr.mxu0 0.0
    %70 = vmatpush1.msra.mxu0 0.0
    %71 = vmatprep.subr.mxu0 0.0
    %72 = vmatpush1.msra.mxu0 0.0
    %73 = vmatprep.subr.mxu0 0.0
    %74 = vmatpush1.msra.mxu0 0.0
    %75 = vmatprep.subr.mxu0 0.0
    %76 = vmatpush1.msra.mxu0 0.0
    %77 = vmatprep.subr.mxu0 0.0
    %78 = vmatpush1.msra.mxu0 0.0
    %79 = vmatprep.subr.mxu0 0.0
    %80 = vmatpush1.msra.mxu0 0.0
    %81 = vmatprep.subr.mxu0 0.0
    %82 = vmatpush1.msra.mxu0 0.0
    %83 = vmatprep.subr.mxu0 0.0
    %84 = vmatpush1.msra.mxu0 0.0
    %85 = vmatprep.subr.mxu0 0.0
    %86 = vmatpush1.msra.mxu0 0.0
    %87 = vmatprep.subr.mxu0 0.0
    %88 = vmatpush1.msra.mxu0 0.0
    %89 = vmatprep.subr.mxu0 0.0
    %90 = vmatpush1.msra.mxu0 0.0
    %91 = vmatprep.subr.mxu0 0.0
    %92 = vmatpush1.msra.mxu0 0.0
    %93 = vmatprep.subr.mxu0 0.0
    %94 = vmatpush1.msra.mxu0 0.0
    %95 = vmatprep.subr.mxu0 0.0
    %96 = vmatpush1.msra.mxu0 0.0
    %97 = vmatprep.subr.mxu0 0.0
    %98 = vmatpush1.msra.mxu0 0.0
    %99 = vmatprep.subr.mxu0 0.0
    %100 = vmatpush1.msra.mxu0 0.0
    %101 = vmatprep.subr.mxu0 0.0
    %102 = vmatpush1.msra.mxu0 0.0
    %103 = vmatprep.subr.mxu0 0.0
    %104 = vmatpush1.msra.mxu0 0.0
    %105 = vmatprep.subr.mxu0 0.0
    %106 = vmatpush1.msra.mxu0 0.0
    %107 = vmatprep.subr.mxu0 0.0
    %108 = vmatpush1.msra.mxu0 0.0
    %109 = vmatprep.subr.mxu0 0.0
    %110 = vmatpush1.msra.mxu0 0.0
    %111 = vmatprep.subr.mxu0 0.0
    %112 = vmatpush1.msra.mxu0 0.0
    %113 = vmatprep.subr.mxu0 0.0
    %114 = vmatpush1.msra.mxu0 0.0
    %115 = vmatprep.mubr.f32.mxu0 0.0
    %116 = vmatmul.mubr.f32.gmra.mrb[0].mxu0 %v49
    %v117 = vpop.f32.mrb[0].mxu0
    %v118 = vadd.f32 %v45, %v117
    %v119 = vpop.f32.mrb[0].mxu0
    %120 = vdwg.mxu0
    %v121 = vtanh.pop %v118
    %v122 = vld [vmem:[%s3] sm:$0xff]
    %v123 = vld [vmem:[%s3 + $0x8] sm:$0xff]
    %v124 = vld [vmem:[%s3 + $0x10] sm:$0xff]
    %v125 = vld [vmem:[%s3 + $0x18] sm:$0xff]
    %v126 = vld [vmem:[%s3 + $0x20] sm:$0xff]
    %v127 = vld [vmem:[%s3 + $0x28] sm:$0xff]
    %v128 = vld [vmem:[%s3 + $0x30] sm:$0xff]
    %v129 = vld [vmem:[%s3 + $0x38] sm:$0xff]
    %v130 = vld [vmem:[%s4] sm:$0x1]
    %v132 = vlaneseq
    %v133 = vshrl.u32 %v132, 7
    %v134 = vsub.s32 0, %v133
    %v135 = vrot.slane %v130, %v134
    %vm137 = vcmask 523264
    %v139 = vsel %vm137, %v121, 0
    %141 = vmatprep.subr.mxu0 0.0
    %142 = vmatpush1.msra.mxu0 %v122
    %143 = vmatprep.subr.mxu0 0.0
    %144 = vmatpush1.msra.mxu0 %v123
    %145 = vmatprep.subr.mxu0 0.0
    %146 = vmatpush1.msra.mxu0 %v124
    %147 = vmatprep.subr.mxu0 0.0
    %148 = vmatpush1.msra.mxu0 %v125
    %149 = vmatprep.subr.mxu0 0.0
    %150 = vmatpush1.msra.mxu0 %v126
    %151 = vmatprep.subr.mxu0 0.0
    %152 = vmatpush1.msra.mxu0 %v127
    %153 = vmatprep.subr.mxu0 0.0
    %154 = vmatpush1.msra.mxu0 %v128
    %155 = vmatprep.subr.mxu0 0.0
    %156 = vmatpush1.msra.mxu0 %v129
    %157 = vmatprep.subr.mxu0 0.0
    %158 = vmatpush1.msra.mxu0 0.0
    %159 = vmatprep.subr.mxu0 0.0
    %160 = vmatpush1.msra.mxu0 0.0
    %161 = vmatprep.subr.mxu0 0.0
    %162 = vmatpush1.msra.mxu0 0.0
    %163 = vmatprep.subr.mxu0 0.0
    %164 = vmatpush1.msra.mxu0 0.0
    %165 = vmatprep.subr.mxu0 0.0
    %166 = vmatpush1.msra.mxu0 0.0
    %167 = vmatprep.subr.mxu0 0.0
    %168 = vmatpush1.msra.mxu0 0.0
    %169 = vmatprep.subr.mxu0 0.0
    %170 = vmatpush1.msra.mxu0 0.0
    %171 = vmatprep.subr.mxu0 0.0
    %172 = vmatpush1.msra.mxu0 0.0
    %173 = vmatprep.subr.mxu0 0.0
    %174 = vmatpush1.msra.mxu0 0.0
    %175 = vmatprep.subr.mxu0 0.0
    %176 = vmatpush1.msra.mxu0 0.0
    %177 = vmatprep.subr.mxu0 0.0
    %178 = vmatpush1.msra.mxu0 0.0
    %179 = vmatprep.subr.mxu0 0.0
    %180 = vmatpush1.msra.mxu0 0.0
    %181 = vmatprep.subr.mxu0 0.0
    %182 = vmatpush1.msra.mxu0 0.0
    %183 = vmatprep.subr.mxu0 0.0
    %184 = vmatpush1.msra.mxu0 0.0
    %185 = vmatprep.subr.mxu0 0.0
    %186 = vmatpush1.msra.mxu0 0.0
    %187 = vmatprep.subr.mxu0 0.0
    %188 = vmatpush1.msra.mxu0 0.0
    %189 = vmatprep.subr.mxu0 0.0
    %190 = vmatpush1.msra.mxu0 0.0
    %191 = vmatprep.subr.mxu0 0.0
    %192 = vmatpush1.msra.mxu0 0.0
    %193 = vmatprep.subr.mxu0 0.0
    %194 = vmatpush1.msra.mxu0 0.0
    %195 = vmatprep.subr.mxu0 0.0
    %196 = vmatpush1.msra.mxu0 0.0
    %197 = vmatprep.subr.mxu0 0.0
    %198 = vmatpush1.msra.mxu0 0.0
    %199 = vmatprep.subr.mxu0 0.0
    %200 = vmatpush1.msra.mxu0 0.0
    %201 = vmatprep.subr.mxu0 0.0
    %202 = vmatpush1.msra.mxu0 0.0
    %203 = vmatprep.subr.mxu0 0.0
    %204 = vmatpush1.msra.mxu0 0.0
    %205 = vmatprep.mubr.f32.mxu0 0.0
    %206 = vmatmul.mubr.f32.gmra.mrb[0].mxu0 %v139
    %v207 = vpop.f32.mrb[0].mxu0
    %v208 = vadd.f32 %v135, %v207
    %v209 = vpop.f32.mrb[0].mxu0
    %210 = vdwg.mxu0
    %v211 = vtanh.pop %v208
    %v212 = vld [vmem:[%s5] sm:$0xff]
    %v213 = vld [vmem:[%s5 + $0x8] sm:$0xff]
    %v214 = vld [vmem:[%s5 + $0x10] sm:$0xff]
    %v215 = vld [vmem:[%s5 + $0x18] sm:$0xff]
    %v216 = vld [vmem:[%s5 + $0x20] sm:$0xff]
    %v217 = vld [vmem:[%s5 + $0x28] sm:$0xff]
    %v218 = vld [vmem:[%s5 + $0x30] sm:$0xff]
    %v219 = vld [vmem:[%s5 + $0x38] sm:$0xff]
    %v220 = vld [vmem:[%s6] sm:$0x1]
    %v222 = vlaneseq
    %v223 = vshrl.u32 %v222, 7
    %v224 = vsub.s32 0, %v223
    %v225 = vrot.slane %v220, %v224
    %v228 = vsel %vm137, %v211, 0
    %230 = vmatprep.subr.mxu0 0.0
    %231 = vmatpush1.msra.mxu0 %v212
    %232 = vmatprep.subr.mxu0 0.0
    %233 = vmatpush1.msra.mxu0 %v213
    %234 = vmatprep.subr.mxu0 0.0
    %235 = vmatpush1.msra.mxu0 %v214
    %236 = vmatprep.subr.mxu0 0.0
    %237 = vmatpush1.msra.mxu0 %v215
    %238 = vmatprep.subr.mxu0 0.0
    %239 = vmatpush1.msra.mxu0 %v216
    %240 = vmatprep.subr.mxu0 0.0
    %241 = vmatpush1.msra.mxu0 %v217
    %242 = vmatprep.subr.mxu0 0.0
    %243 = vmatpush1.msra.mxu0 %v218
    %244 = vmatprep.subr.mxu0 0.0
    %245 = vmatpush1.msra.mxu0 %v219
    %246 = vmatprep.subr.mxu0 0.0
    %247 = vmatpush1.msra.mxu0 0.0
    %248 = vmatprep.subr.mxu0 0.0
    %249 = vmatpush1.msra.mxu0 0.0
    %250 = vmatprep.subr.mxu0 0.0
    %251 = vmatpush1.msra.mxu0 0.0
    %252 = vmatprep.subr.mxu0 0.0
    %253 = vmatpush1.msra.mxu0 0.0
    %254 = vmatprep.subr.mxu0 0.0
    %255 = vmatpush1.msra.mxu0 0.0
    %256 = vmatprep.subr.mxu0 0.0
    %257 = vmatpush1.msra.mxu0 0.0
    %258 = vmatprep.subr.mxu0 0.0
    %259 = vmatpush1.msra.mxu0 0.0
    %260 = vmatprep.subr.mxu0 0.0
    %261 = vmatpush1.msra.mxu0 0.0
    %262 = vmatprep.subr.mxu0 0.0
    %263 = vmatpush1.msra.mxu0 0.0
    %264 = vmatprep.subr.mxu0 0.0
    %265 = vmatpush1.msra.mxu0 0.0
    %266 = vmatprep.subr.mxu0 0.0
    %267 = vmatpush1.msra.mxu0 0.0
    %268 = vmatprep.subr.mxu0 0.0
    %269 = vmatpush1.msra.mxu0 0.0
    %270 = vmatprep.subr.mxu0 0.0
    %271 = vmatpush1.msra.mxu0 0.0
    %272 = vmatprep.subr.mxu0 0.0
    %273 = vmatpush1.msra.mxu0 0.0
    %274 = vmatprep.subr.mxu0 0.0
    %275 = vmatpush1.msra.mxu0 0.0
    %276 = vmatprep.subr.mxu0 0.0
    %277 = vmatpush1.msra.mxu0 0.0
    %278 = vmatprep.subr.mxu0 0.0
    %279 = vmatpush1.msra.mxu0 0.0
    %280 = vmatprep.subr.mxu0 0.0
    %281 = vmatpush1.msra.mxu0 0.0
    %282 = vmatprep.subr.mxu0 0.0
    %283 = vmatpush1.msra.mxu0 0.0
    %284 = vmatprep.subr.mxu0 0.0
    %285 = vmatpush1.msra.mxu0 0.0
    %286 = vmatprep.subr.mxu0 0.0
    %287 = vmatpush1.msra.mxu0 0.0
    %288 = vmatprep.subr.mxu0 0.0
    %289 = vmatpush1.msra.mxu0 0.0
    %290 = vmatprep.subr.mxu0 0.0
    %291 = vmatpush1.msra.mxu0 0.0
    %292 = vmatprep.subr.mxu0 0.0
    %293 = vmatpush1.msra.mxu0 0.0
    %294 = vmatprep.mubr.f32.mxu0 0.0
    %295 = vmatmul.mubr.f32.gmra.mrb[0].mxu0 %v228
    %v296 = vpop.f32.mrb[0].mxu0
    %v297 = vadd.f32 %v225, %v296
    %v298 = vpop.f32.mrb[0].mxu0
    %299 = vdwg.mxu0
    %vm300 = vcmask 31744
    %301 = vst.msk [vmem:[%s7] sm:$0xff] %vm300, %v297
    // Predicated region
    $region34: #{tpu_custom_call.1} parent=1 // pred_check
      _
    $region35: #{tpu_custom_call.1} parent=1 // pred_check_branch
      %303 = sbr.rel (0) target = $region37
    $region36: #{tpu_custom_call.1} parent=1 // pred_region
      _
    $region37: #{tpu_custom_call.1} parent=1 // pred_fallthru
      _
    // Predicated region
    $region38: #{tpu_custom_call.1} parent=1 // pred_check
      _
    $region39: #{tpu_custom_call.1} parent=1 // pred_check_branch
      %305 = sbr.rel (0) target = $region41
    $region40: #{tpu_custom_call.1} parent=1 // pred_region
      _
    $region41: #{tpu_custom_call.1} parent=1 // pred_fallthru
      _
    %306 = vsyncpa [#allocation3], 1

</llo_original>
